<compile_context>
chip_gen: v5e
topology: v5e:2x2
jax: 0.10.0
libtpu: 0.0.40
codegen_flags: <defaults>
</compile_context>

<pallas_src>
import math

import jax
import jax.numpy as jnp
from jax.experimental import pallas as pl
from jax.experimental.pallas import tpu as pltpu

# The PyTorch forward() hardcodes std=0.2 (it ignores self.stddev); reproduce that.
_NOISE_STD = 0.2
_TARGET_BLOCK_BYTES = 2 * 1024 * 1024        # ~2 MiB f32 per block per buffer
_LANE_CANDIDATES = (512, 256, 128)           # lane-dense widths (multiples of 128)


def _hash32(x):
    """lowbias32-style 32-bit mixer — used only on the *scalar* seed path."""
    x = x ^ (x >> jnp.uint32(16))
    x = x * jnp.uint32(0x7FEB352D)
    x = x ^ (x >> jnp.uint32(15))
    x = x * jnp.uint32(0x846CA68B)
    x = x ^ (x >> jnp.uint32(16))
    return x


def _gaussian_noise_kernel(seed_ref, x_ref, o_ref):
    tr, lw = x_ref.shape
    half = lw // 2

    # --- scalar path: strong-hash the seed once, fold the per-step counter
    # offset into the same scalar so the vector path only needs one add.
    seed = seed_ref[0].astype(jnp.uint32)
    key = _hash32(seed + jnp.uint32(0x9E3779B9))
    blk = pl.program_id(0)
    salt = key + blk.astype(jnp.uint32) * jnp.uint32(tr * half)   # uint32, no i32 wrap

    # --- per-pair counter; each pair yields two normals (cos / sin branches)
    # covering the two lane halves of the output tile.
    row = jax.lax.broadcasted_iota(jnp.int32, (tr, half), 0)
    col = jax.lax.broadcasted_iota(jnp.int32, (tr, half), 1)
    h = (row * half + col).astype(jnp.uint32) + salt

    # --- cheap single-multiply mixer (the key is already strongly hashed).
    # Residual correlation between the hi/lo 16-bit halves is negligible for
    # std=0.2 additive noise.
    h = h ^ (h >> jnp.uint32(16))
    h = h * jnp.uint32(0x7FEB352D)
    h = h ^ (h >> jnp.uint32(15))

    # --- two disjoint 16-bit uniforms via the exponent-bitcast trick.
    exp_one = jnp.uint32(0x3F800000)
    f1 = pltpu.bitcast(((h >> jnp.uint32(16)) << jnp.uint32(7)) | exp_one,
                       jnp.float32)                       # [1, 2), from hi 16 bits
    f2 = pltpu.bitcast(((h & jnp.uint32(0xFFFF)) << jnp.uint32(7)) | exp_one,
                       jnp.float32)                       # [1, 2), from lo 16 bits
    u1 = jnp.float32(2.0) - f1                            # (0, 1] -> log() finite

    # --- Box-Muller, using BOTH outputs.  std is folded into the radius:
    # std*sqrt(-2 ln u) = sqrt(-2*std^2 * ln u).  cos/sin are 2*pi-periodic, so
    # theta = 2*pi*f2 (f2 in [1,2)) is equivalent to 2*pi*u2 (u2 in [0,1)).
    r = jnp.sqrt(jnp.float32(-2.0 * _NOISE_STD * _NOISE_STD) * jnp.log(u1))
    theta = jnp.float32(2.0 * math.pi) * f2
    z0 = r * jnp.cos(theta)                               # ~ N(0, std)
    z1 = r * jnp.sin(theta)                               # ~ N(0, std), independent

    o_ref[:, :half] = (x_ref[:, :half].astype(jnp.float32) + z0).astype(o_ref.dtype)
    o_ref[:, half:] = (x_ref[:, half:].astype(jnp.float32) + z1).astype(o_ref.dtype)


def gaussian_noise_layer(x, seed: int, training: bool = True):
    """JAX/Pallas equivalent of GaussianNoiseLayer.forward.

    # TODO(synk): PyTorch draws fresh global RNG noise every call; here the
    # caller must pass a different `seed` each training step to match that.
    """
    if not training:
        return x  # eval mode: identity, exactly like the PyTorch module

    orig_shape = x.shape
    orig_dtype = x.dtype
    total = x.size
    if total == 0:
        return x

    flat = x.reshape(-1)  # metadata-only

    # Widest lane-dense width that divides the element count -> no pad copy.
    lw = next((c for c in _LANE_CANDIDATES if total % c == 0), None)
    if lw is None:
        # TODO(synk): element counts not divisible by 128 still pay one pad and
        # one tail-slice HBM copy; an in-kernel masked tail store would remove it.
        lw = 128
        padded_total = pl.cdiv(total, lw) * lw
        flat = jnp.pad(flat, (0, padded_total - total))
    else:
        padded_total = total

    rows = padded_total // lw
    x2 = flat.reshape(rows, lw)

    itemsize = jnp.dtype(orig_dtype).itemsize
    sub = {4: 8, 2: 16, 1: 32}.get(itemsize, 8)           # sublane quantum per dtype
    max_rows = max(sub, (_TARGET_BLOCK_BYTES // (lw * 4)) // sub * sub)
    if rows <= sub:
        tr = rows                                          # one tiny full-extent block
    else:
        # >=2 grid steps whenever possible (keeps both v7x TensorCores busy),
        # capped at ~2 MiB f32 per block; ragged last block handled by Pallas.
        tr = min(max_rows, pl.cdiv(pl.cdiv(rows, 2), sub) * sub)
    num_blocks = pl.cdiv(rows, tr)

    seed_arr = jnp.array([seed], dtype=jnp.int32)

    out = pl.pallas_call(
        _gaussian_noise_kernel,
        out_shape=jax.ShapeDtypeStruct((rows, lw), orig_dtype),
        grid_spec=pltpu.PrefetchScalarGridSpec(
            num_scalar_prefetch=1,                         # seed lands in SMEM
            grid=(num_blocks,),
            in_specs=[pl.BlockSpec((tr, lw), lambda i, seed: (i, 0))],
            out_specs=pl.BlockSpec((tr, lw), lambda i, seed: (i, 0)),
        ),
        compiler_params=pltpu.CompilerParams(
            dimension_semantics=("parallel",),             # tiles are independent
            vmem_limit_bytes=32 * 1024 * 1024,
        ),
        cost_estimate=pl.CostEstimate(
            flops=20 * padded_total,                       # hash + BM vector ops/elem
            transcendentals=2 * padded_total,              # log/sqrt/cos/sin per pair
            bytes_accessed=2 * padded_total * itemsize,
        ),
    )(seed_arr, x2)

    out_flat = out.reshape(-1)
    if padded_total != total:
        out_flat = out_flat[:total]
    return out_flat.reshape(orig_shape)


if __name__ == "__main__":
    key = jax.random.PRNGKey(0)
    # Small NCHW input, matching a typical segmentation feature map.
    x = jax.random.normal(key, (2, 4, 16, 16), dtype=jnp.float32)

    # Training mode: x + N(0, 0.2)
    y_train = jax.block_until_ready(gaussian_noise_layer(x, seed=0, training=True))
    assert y_train.shape == x.shape and y_train.dtype == x.dtype

    # Sanity: the added noise should have std ~0.2, near-zero mean, nonzero.
    noise = y_train - x
    assert abs(float(jnp.std(noise)) - _NOISE_STD) < 0.05
    assert abs(float(jnp.mean(noise))) < 0.05
    assert float(jnp.max(jnp.abs(noise))) > 0.0

    # Eval mode: identity.
    y_eval = jax.block_until_ready(gaussian_noise_layer(x, seed=0, training=False))
    assert jnp.array_equal(y_eval, x)

    print("KERNEL_OK")
</pallas_src>

<mosaic_0001>
module attributes {stable_mosaic.version = 11 : i64} {
  func.func @_gaussian_noise_kernel(%arg0: i32, %arg1: memref<1xi32, #tpu.memory_space<smem>>, %arg2: memref<4x512xf32, #tpu.memory_space<vmem>>, %arg3: memref<4x512xf32, #tpu.memory_space<vmem>>) attributes {dimension_semantics = [#tpu.dimension_semantics<parallel>], iteration_bounds = array<i64: 1>, scalar_prefetch = 1 : i64, scratch_operands = 0 : i64, tpu.core_type = #tpu.core_type<tc>, window_params = [{transform_indices = @transform_0, window_bounds = array<i64: 4, 512>}, {transform_indices = @transform_1, window_bounds = array<i64: 4, 512>}]} {
    %c0 = arith.constant 0 : index
    %0 = memref.load %arg1[%c0] : memref<1xi32, #tpu.memory_space<smem>>
    %c-1640531527_i32 = arith.constant -1640531527 : i32
    %1 = arith.addi %0, %c-1640531527_i32 : i32
    %c16_i32 = arith.constant 16 : i32
    %2 = arith.shrui %1, %c16_i32 : i32
    %3 = arith.xori %1, %2 : i32
    %c2146121005_i32 = arith.constant 2146121005 : i32
    %4 = arith.muli %3, %c2146121005_i32 : i32
    %c15_i32 = arith.constant 15 : i32
    %5 = arith.shrui %4, %c15_i32 : i32
    %6 = arith.xori %4, %5 : i32
    %c-2073254261_i32 = arith.constant -2073254261 : i32
    %7 = arith.muli %6, %c-2073254261_i32 : i32
    %c16_i32_0 = arith.constant 16 : i32
    %8 = arith.shrui %7, %c16_i32_0 : i32
    %9 = arith.xori %7, %8 : i32
    %c1024_i32 = arith.constant 1024 : i32
    %10 = arith.muli %arg0, %c1024_i32 : i32
    %11 = arith.addi %9, %10 : i32
    %12 = tpu.iota {dimensions = array<i32: 0>} : vector<4x256xi32>
    %13 = tpu.iota {dimensions = array<i32: 1>} : vector<4x256xi32>
    %c256_i32 = arith.constant 256 : i32
    %14 = vector.broadcast %c256_i32 : i32 to vector<4x256xi32>
    %15 = arith.muli %12, %14 : vector<4x256xi32>
    %16 = arith.addi %15, %13 : vector<4x256xi32>
    %17 = vector.broadcast %11 : i32 to vector<4x256xi32>
    %18 = arith.addi %16, %17 : vector<4x256xi32>
    %c16_i32_1 = arith.constant 16 : i32
    %19 = vector.broadcast %c16_i32_1 : i32 to vector<4x256xi32>
    %20 = arith.shrui %18, %19 : vector<4x256xi32>
    %21 = arith.xori %18, %20 : vector<4x256xi32>
    %c2146121005_i32_2 = arith.constant 2146121005 : i32
    %22 = vector.broadcast %c2146121005_i32_2 : i32 to vector<4x256xi32>
    %23 = arith.muli %21, %22 : vector<4x256xi32>
    %c15_i32_3 = arith.constant 15 : i32
    %24 = vector.broadcast %c15_i32_3 : i32 to vector<4x256xi32>
    %25 = arith.shrui %23, %24 : vector<4x256xi32>
    %26 = arith.xori %23, %25 : vector<4x256xi32>
    %c16_i32_4 = arith.constant 16 : i32
    %27 = vector.broadcast %c16_i32_4 : i32 to vector<4x256xi32>
    %28 = arith.shrui %26, %27 : vector<4x256xi32>
    %c7_i32 = arith.constant 7 : i32
    %29 = vector.broadcast %c7_i32 : i32 to vector<4x256xi32>
    %30 = arith.shli %28, %29 : vector<4x256xi32>
    %c1065353216_i32 = arith.constant 1065353216 : i32
    %31 = vector.broadcast %c1065353216_i32 : i32 to vector<4x256xi32>
    %32 = arith.ori %30, %31 : vector<4x256xi32>
    %33 = tpu.bitcast %32 : vector<4x256xi32> -> vector<4x256xf32>
    %c65535_i32 = arith.constant 65535 : i32
    %34 = vector.broadcast %c65535_i32 : i32 to vector<4x256xi32>
    %35 = arith.andi %26, %34 : vector<4x256xi32>
    %c7_i32_5 = arith.constant 7 : i32
    %36 = vector.broadcast %c7_i32_5 : i32 to vector<4x256xi32>
    %37 = arith.shli %35, %36 : vector<4x256xi32>
    %c1065353216_i32_6 = arith.constant 1065353216 : i32
    %38 = vector.broadcast %c1065353216_i32_6 : i32 to vector<4x256xi32>
    %39 = arith.ori %37, %38 : vector<4x256xi32>
    %40 = tpu.bitcast %39 : vector<4x256xi32> -> vector<4x256xf32>
    %cst = arith.constant 2.000000e+00 : f32
    %41 = vector.broadcast %cst : f32 to vector<4x256xf32>
    %42 = arith.subf %41, %33 : vector<4x256xf32>
    %43 = math.log %42 : vector<4x256xf32>
    %cst_7 = arith.constant -8.000000e-02 : f32
    %44 = vector.broadcast %cst_7 : f32 to vector<4x256xf32>
    %45 = arith.mulf %44, %43 : vector<4x256xf32>
    %46 = math.sqrt %45 : vector<4x256xf32>
    %cst_8 = arith.constant 6.28318548 : f32
    %47 = vector.broadcast %cst_8 : f32 to vector<4x256xf32>
    %48 = arith.mulf %47, %40 : vector<4x256xf32>
    %49 = math.cos %48 : vector<4x256xf32>
    %50 = arith.mulf %46, %49 : vector<4x256xf32>
    %51 = math.sin %48 : vector<4x256xf32>
    %52 = arith.mulf %46, %51 : vector<4x256xf32>
    %c0_9 = arith.constant 0 : index
    %c0_10 = arith.constant 0 : index
    %53 = vector.load %arg2[%c0_9, %c0_10] : memref<4x512xf32, #tpu.memory_space<vmem>>, vector<4x256xf32>
    %54 = arith.addf %53, %50 : vector<4x256xf32>
    %c0_11 = arith.constant 0 : index
    %c0_12 = arith.constant 0 : index
    %55 = vector.load %arg3[%c0_11, %c0_12] : memref<4x512xf32, #tpu.memory_space<vmem>>, vector<4x256xf32>
    tpu.vector_store %arg3[%c0_11, %c0_12], %54 {strides = array<i32>} : memref<4x512xf32, #tpu.memory_space<vmem>>, vector<4x256xf32>,
    %c0_13 = arith.constant 0 : index
    %c256 = arith.constant 256 : index
    %56 = vector.load %arg2[%c0_13, %c256] : memref<4x512xf32, #tpu.memory_space<vmem>>, vector<4x256xf32>
    %57 = arith.addf %56, %52 : vector<4x256xf32>
    %c0_14 = arith.constant 0 : index
    %c256_15 = arith.constant 256 : index
    %58 = vector.load %arg3[%c0_14, %c256_15] : memref<4x512xf32, #tpu.memory_space<vmem>>, vector<4x256xf32>
    tpu.vector_store %arg3[%c0_14, %c256_15], %57 {strides = array<i32>} : memref<4x512xf32, #tpu.memory_space<vmem>>, vector<4x256xf32>,
    return
  }
  func.func @transform_0(%arg0: i32, %arg1: memref<1xi32, #tpu.memory_space<smem>>) -> (i32, i32) {
    %c0_i32 = arith.constant 0 : i32
    %c0_i32_0 = arith.constant 0 : i32
    return %arg0, %c0_i32 : i32, i32
  }
  func.func @transform_1(%arg0: i32, %arg1: memref<1xi32, #tpu.memory_space<smem>>) -> (i32, i32) {
    %c0_i32 = arith.constant 0 : i32
    %c0_i32_0 = arith.constant 0 : i32
    return %arg0, %c0_i32 : i32, i32
  }
}

</mosaic_0001>

<llo_original>
// kernel: tpu_custom_call.1
$region0: #{tpu_custom_call.1}
  #allocation0 [shape = 'u32[]', space=smem, size = 0x4, offset = 0x4, fixed_abs, tag = 'smem constant byte address 0x4 - core index']
  #allocation1 [shape = 'u32[72,128]{1,0:T(1,128)}', space=vmem, size = 0x9000, scoped, tag = 'internal scratch']
  #allocation2 [shape = 's32[1]{0}', space=sflag, size = 0x4, scoped, tag = 'scoped memory for tpu_custom_call.1']
  #allocation3 [shape = 's32[1]{0:T(128)S(6)}', space=smem, size = 0x200, scoped, tag = 'prefetched SMEM operand 0']
  %s0 = inlined_call_operand.<no memory space> [shape: s32[1], index: 0, kind: input, shape index: {}]
  %s1 = inlined_call_operand.hbm [shape: f32[4,512], index: 1, kind: input, shape index: {}]
  %s2 = inlined_call_operand.hbm [shape: f32[4,512], index: 2, kind: output, shape index: {}]
  %s3 = sld [smem:[#allocation0]]
  $region18: #{tpu_custom_call.1} parent=0
    _
  %s5 = ssub.s32 1, %s3
  %s6 = scalar_select 0, %s5, %s3
  %7 = sst [smem:[#allocation3]] %s0
  $region1: #{tpu_custom_call.1} parent=0
    #allocation4 [shape = 'u8[8192]{0}', space=vmem, size = 0x2000, scoped, tag = 'input window, operand 1, single buffered']
    #allocation5 [shape = 's32[1]{0}', space=sflag, size = 0x4, scoped, tag = 'scoped memory for tpu_custom_call.1']
    #allocation6 [shape = 's32[1]{0}', space=sflag, size = 0x4, scoped, tag = 'scoped memory for tpu_custom_call.1']
    #allocation7 [shape = 'u8[8192]{0}', space=vmem, size = 0x2000, scoped, tag = 'output window, operand 0, single buffered']
    %8 = vsyncpa [#allocation5], 0
    %9 = vsyncpa [#allocation6], 0
    // Predicated region
    $region2: #{tpu_custom_call.1} parent=1 // pred_check
      _
    $region3: #{tpu_custom_call.1} parent=1 // pred_check_branch
      %11 = sbr.rel (0) target = $region5
    $region4: #{tpu_custom_call.1} parent=1 // pred_region
      %13 = vsyncadd [#allocation5], 0
      %s15 = sshll.u32 %s1, 4
      %s16 = int_to_ptr.hbm [resolvable:$true] %s15
      %s17 = sshll.u32 [#allocation4], 4
      %s18 = int_to_ptr.vmem [resolvable:$true] %s17
      %20 = dma.hbm_to_vmem [thread:$0]  %s16, 256, %s18, [#allocation5]
    $region5: #{tpu_custom_call.1} parent=1 // pred_fallthru
      _
    // Predicated region
    $region6: #{tpu_custom_call.1} parent=1 // pred_check
      _
    $region7: #{tpu_custom_call.1} parent=1 // pred_check_branch
      %22 = sbr.rel (0) target = $region9
    $region8: #{tpu_custom_call.1} parent=1 // pred_region
      %24 = dma.done [#allocation5], 256
    $region9: #{tpu_custom_call.1} parent=1 // pred_fallthru
      _
    %s25 = sld [smem:[#allocation3]]
    %s26 = sadd.s32 %s25, 2654435769
    %s27 = sshrl.u32 %s26, 16
    %s28 = sxor.u32 %s26, %s27
    %s29 = smul.u32 %s28, 2146121005
    %s30 = sshrl.u32 %s29, 15
    %s31 = sxor.u32 %s29, %s30
    %s32 = smul.u32 %s31, 2221713035
    %s33 = sshrl.u32 %s32, 16
    %s34 = sxor.u32 %s32, %s33
    %s35 = smul.u32 0, 1024
    %s36 = sadd.s32 %s34, %s35
    %v37 = vlaneseq
    %v38 = vshrl.u32 %v37, 7
    %v39 = vlaneseq
    %v40 = vand.u32 %v39, 127
    %v41 = vadd.s32 %v40, 128
    %v42 = vmul.u32 %v38, 256
    %v43 = vadd.s32 %v42, %v40
    %v44 = vadd.s32 %v42, %v41
    %v45 = vstv %s36
    %v46 = vadd.s32 %v43, %v45
    %v47 = vadd.s32 %v44, %v45
    %v48 = vshrl.u32 %v46, 16
    %v49 = vshrl.u32 %v47, 16
    %v50 = vxor.u32 %v46, %v48
    %v51 = vxor.u32 %v47, %v49
    %v52 = vmul.u32 %v50, 2146121005
    %v53 = vmul.u32 %v51, 2146121005
    %v54 = vshrl.u32 %v52, 15
    %v55 = vshrl.u32 %v53, 15
    %v56 = vxor.u32 %v52, %v54
    %v57 = vxor.u32 %v53, %v55
    %v58 = vshrl.u32 %v56, 16
    %v59 = vshrl.u32 %v57, 16
    %v60 = vshll.u32 %v58, 7
    %v61 = vshll.u32 %v59, 7
    %v62 = vor.u32 %v60, 1065353216
    %v63 = vor.u32 %v61, 1065353216
    %v66 = vand.u32 %v56, 65535
    %v67 = vand.u32 %v57, 65535
    %v68 = vshll.u32 %v66, 7
    %v69 = vshll.u32 %v67, 7
    %v70 = vor.u32 %v68, 1065353216
    %v71 = vor.u32 %v69, 1065353216
    %v74 = vsub.f32 2.0, %v62
    %v75 = vsub.f32 2.0, %v63
    %v76 = vlog2.pop %v74
    %v77 = vmul.f32 %v76, 0.6931472
    %v78 = vlog2.pop %v75
    %v79 = vmul.f32 %v78, 0.6931472
    %v80 = vmul.f32 %v77, -0.08
    %v81 = vmul.f32 %v79, -0.08
    %v82 = vrsqrt.pop %v80
    %v83 = vmul.f32 %v82, %v80
    %v84 = vmul.f32 %v83, %v82
    %v85 = vmul.f32 0.5, %v84
    %v86 = vsub.f32 1.5, %v85
    %v87 = vmul.f32 %v82, %v86
    %v88 = vmul.f32 %v80, %v87
    %vm89 = vcmp.eq.f32.partialorder %v80, inf
    %v90 = vsel %vm89, %v80, %v88
    %vm91 = vcmp.eq.f32.partialorder %v80, 0.0
    %v92 = vand.u32 %v80, 2147483648
    %v93 = vsel %vm91, %v92, %v90
    %v94 = vrsqrt.pop %v81
    %v95 = vmul.f32 %v94, %v81
    %v96 = vmul.f32 %v95, %v94
    %v97 = vmul.f32 0.5, %v96
    %v98 = vsub.f32 1.5, %v97
    %v99 = vmul.f32 %v94, %v98
    %v100 = vmul.f32 %v81, %v99
    %vm101 = vcmp.eq.f32.partialorder %v81, inf
    %v102 = vsel %vm101, %v81, %v100
    %vm103 = vcmp.eq.f32.partialorder %v81, 0.0
    %v104 = vand.u32 %v81, 2147483648
    %v105 = vsel %vm103, %v104, %v102
    %v106 = vmul.f32 %v70, 6.2831855
    %v107 = vmul.f32 %v71, 6.2831855
    %v108 = vand.u32 2147483647, %v106
    %vm109 = vcmp.le.f32.partialorder %v108, 0.7853982
    %vm110 = vcmp.lt.s32.totalorder %v106, 0
    %v111 = vand.u32 %v106, 2139095040
    %v112 = vshrl.u32 %v111, 23
    %v113 = vsub.s32 %v112, 127
    %v114 = vand.u32 2147483647, %v106
    %v115 = vand.u32 %v114, 8388607
    %v116 = vor.u32 %v115, 8388608
    %v117 = vsub.s32 0, %v116
    %v118 = vadd.s32 %v113, 1
    %vm119 = vcmp.gt.s32.totalorder %v118, 0
    %v120 = vsel %vm119, %v118, 0
    %v121 = vshrl.u32 %v120, 5
    %v122 = vand.u32 %v120, 31
    %v123 = vsub.s32 32, %v122
    %v124 = vshrl.u32 683565275, %v123
    %v125 = vshll.u32 683565275, %v122
    %v126 = vshrl.u32 2475754826, %v123
    %v127 = vor.u32 %v125, %v126
    %v128 = vshll.u32 2475754826, %v122
    %v129 = vshrl.u32 2131351028, %v123
    %v130 = vor.u32 %v128, %v129
    %v131 = vshll.u32 2131351028, %v122
    %v132 = vshrl.u32 2102212464, %v123
    %v133 = vor.u32 %v131, %v132
    %v134 = vshll.u32 2102212464, %v122
    %v135 = vshrl.u32 920167782, %v123
    %v136 = vor.u32 %v134, %v135
    %v137 = vshll.u32 920167782, %v122
    %v138 = vshrl.u32 1326507024, %v123
    %v139 = vor.u32 %v137, %v138
    %vm140 = vcmp.lt.s32.totalorder %v121, 1
    %vm141 = vcmp.lt.s32.totalorder %v121, 2
    %vm142 = vcmp.lt.s32.totalorder %v121, 3
    %vm143 = vcmp.lt.s32.totalorder %v121, 4
    %v144 = vsel %vm140, %v124, %v127
    %v145 = vsel %vm143, %v133, 2102212464
    %v146 = vsel %vm142, %v130, %v145
    %v147 = vsel %vm141, %v144, %v146
    %v148 = vsel %vm140, %v127, %v130
    %v149 = vsel %vm143, %v136, 920167782
    %v150 = vsel %vm142, %v133, %v149
    %v151 = vsel %vm141, %v148, %v150
    %v152 = vsel %vm140, %v130, %v133
    %v153 = vsel %vm143, %v139, 1326507024
    %v154 = vsel %vm142, %v136, %v153
    %v155 = vsel %vm141, %v152, %v154
    %v156 = vshll.u32 %v116, 8
    %v157 = vand.u32 %v156, 65535
    %v158 = vshrl.u32 %v156, 16
    %v159 = vand.u32 %v155, 65535
    %v160 = vshrl.u32 %v155, 16
    %v161 = vmul.u32 %v157, %v159
    %v162 = vmul.u32 %v157, %v160
    %v163 = vmul.u32 %v158, %v159
    %v164 = vmul.u32 %v158, %v160
    %v165 = vshll.u32 %v162, 16
    %v166 = vshrl.u32 %v162, 16
    %v167 = vshll.u32 %v163, 16
    %v168 = vshrl.u32 %v163, 16
    %vm169 = vc.u32 %v161, %v165
    %v170 = vsel %vm169, 1, 0
    %v171 = vadd.s32 %v161, %v165
    %v172 = vadd.s32 %v164, %v170
    %vm173 = vc.u32 %v171, %v167
    %v174 = vsel %vm173, 1, 0
    %v175 = vadd.s32 %v171, %v167
    %v176 = vadd.s32 %v172, %v174
    %v177 = vadd.s32 %v176, %v166
    %v178 = vadd.s32 %v177, %v168
    %v179 = vand.u32 %v156, 65535
    %v180 = vshrl.u32 %v156, 16
    %v181 = vand.u32 %v151, 65535
    %v182 = vshrl.u32 %v151, 16
    %v183 = vmul.u32 %v179, %v181
    %v184 = vmul.u32 %v179, %v182
    %v185 = vmul.u32 %v180, %v181
    %v186 = vmul.u32 %v180, %v182
    %v187 = vshll.u32 %v184, 16
    %v188 = vshrl.u32 %v184, 16
    %v189 = vshll.u32 %v185, 16
    %v190 = vshrl.u32 %v185, 16
    %vm191 = vc.u32 %v183, %v187
    %v192 = vsel %vm191, 1, 0
    %v193 = vadd.s32 %v183, %v187
    %v194 = vadd.s32 %v186, %v192
    %vm195 = vc.u32 %v193, %v189
    %v196 = vsel %vm195, 1, 0
    %v197 = vadd.s32 %v193, %v189
    %v198 = vadd.s32 %v194, %v196
    %v199 = vadd.s32 %v198, %v188
    %v200 = vadd.s32 %v199, %v190
    %v201 = vmul.u32 %v156, %v147
    %v202 = vadd.s32 %v178, %v197
    %vm203 = vc.u32 %v178, %v197
    %v204 = vadd.s32 %v200, 1
    %v205 = vsel %vm203, %v204, %v200
    %v206 = vadd.s32 %v201, %v205
    %v207 = vadd.s32 %v206, 536870912
    %v208 = vshrl.u32 %v207, 30
    %v209 = vshll.u32 %v208, 30
    %v210 = vsub.s32 %v206, %v209
    %vm211 = vcmp.lt.s32.totalorder %v210, 0
    %v212 = vsub.s32 0, %v210
    %v213 = vsel %vm211, %v212, %v210
    %v214 = vclz %v213
    %v215 = vsub.s32 %v214, 2
    %vm216 = vcmp.gt.s32.totalorder 0, %v215
    %v217 = vsel %vm216, 0, %v215
    %v218 = vsub.s32 32, %v217
    %v219 = vshll.u32 %v210, %v217
    %v220 = vshrl.u32 %v202, %v218
    %v221 = vor.u32 %v219, %v220
    %v222 = vsub.s32 4294967266, %v217
    %v223 = vadd.s32 %v222, 127
    %v224 = vshll.u32 %v223, 23
    %v225 = vor.u32 4788187, %v224
    %v226 = vand.u32 2147483647, %v225
    %v228 = vcvt.s32.f32 %v221
    %v229 = vmul.f32 %v228, %v226
    %v230 = vxor.u32 %v229, 2147483648
    %v231 = vsel %vm110, %v230, %v229
    %v232 = vsub.s32 4, %v208
    %v233 = vsel %vm110, %v232, %v208
    %v234 = vsel %vm109, %v106, %v231
    %v235 = vsel %vm109, 0, %v233
    %v236 = vmul.f32 %v234, %v234
    %v237 = vmul.f32 %v236, -0.001358992
    %v238 = vadd.f32 %v237, 0.041655596
    %v239 = vmul.f32 %v236, %v238
    %v240 = vadd.f32 %v239, -0.4999988
    %v241 = vmul.f32 %v236, %v240
    %v242 = vadd.f32 1.0, %v241
    %v243 = vmul.f32 %v234, %v234
    %v244 = vmul.f32 %v243, -0.00019511016
    %v245 = vadd.f32 %v244, 0.008332121
    %v246 = vmul.f32 %v243, %v245
    %v247 = vadd.f32 %v246, -0.16666654
    %v248 = vmul.f32 %v243, %v247
    %v249 = vadd.f32 %v248, 1.0
    %v250 = vmul.f32 %v249, %v234
    %vm251 = vweird.f32 %v106
    %v252 = vand.u32 %v235, 3
    %vm253 = vcmp.lt.s32.totalorder %v252, 2
    %vm254 = vcmp.eq.s32.totalorder %v252, 0
    %v255 = vxor.u32 %v250, 2147483648
    %v256 = vsel %vm254, %v242, %v255
    %vm257 = vcmp.eq.s32.totalorder %v252, 2
    %v258 = vxor.u32 %v242, 2147483648
    %v259 = vsel %vm257, %v258, %v250
    %v260 = vsel %vm253, %v256, %v259
    %v261 = vsel %vm251, nan, %v260
    %v262 = vand.u32 2147483647, %v107
    %vm263 = vcmp.le.f32.partialorder %v262, 0.7853982
    %vm264 = vcmp.lt.s32.totalorder %v107, 0
    %v265 = vand.u32 %v107, 2139095040
    %v266 = vshrl.u32 %v265, 23
    %v267 = vsub.s32 %v266, 127
    %v268 = vand.u32 2147483647, %v107
    %v269 = vand.u32 %v268, 8388607
    %v270 = vor.u32 %v269, 8388608
    %v271 = vsub.s32 0, %v270
    %v272 = vadd.s32 %v267, 1
    %vm273 = vcmp.gt.s32.totalorder %v272, 0
    %v274 = vsel %vm273, %v272, 0
    %v275 = vshrl.u32 %v274, 5
    %v276 = vand.u32 %v274, 31
    %v277 = vsub.s32 32, %v276
    %v278 = vshrl.u32 683565275, %v277
    %v279 = vshll.u32 683565275, %v276
    %v280 = vshrl.u32 2475754826, %v277
    %v281 = vor.u32 %v279, %v280
    %v282 = vshll.u32 2475754826, %v276
    %v283 = vshrl.u32 2131351028, %v277
    %v284 = vor.u32 %v282, %v283
    %v285 = vshll.u32 2131351028, %v276
    %v286 = vshrl.u32 2102212464, %v277
    %v287 = vor.u32 %v285, %v286
    %v288 = vshll.u32 2102212464, %v276
    %v289 = vshrl.u32 920167782, %v277
    %v290 = vor.u32 %v288, %v289
    %v291 = vshll.u32 920167782, %v276
    %v292 = vshrl.u32 1326507024, %v277
    %v293 = vor.u32 %v291, %v292
    %vm294 = vcmp.lt.s32.totalorder %v275, 1
    %vm295 = vcmp.lt.s32.totalorder %v275, 2
    %vm296 = vcmp.lt.s32.totalorder %v275, 3
    %vm297 = vcmp.lt.s32.totalorder %v275, 4
    %v298 = vsel %vm294, %v278, %v281
    %v299 = vsel %vm297, %v287, 2102212464
    %v300 = vsel %vm296, %v284, %v299
    %v301 = vsel %vm295, %v298, %v300
    %v302 = vsel %vm294, %v281, %v284
    %v303 = vsel %vm297, %v290, 920167782
    %v304 = vsel %vm296, %v287, %v303
    %v305 = vsel %vm295, %v302, %v304
    %v306 = vsel %vm294, %v284, %v287
    %v307 = vsel %vm297, %v293, 1326507024
    %v308 = vsel %vm296, %v290, %v307
    %v309 = vsel %vm295, %v306, %v308
    %v310 = vshll.u32 %v270, 8
    %v311 = vand.u32 %v310, 65535
    %v312 = vshrl.u32 %v310, 16
    %v313 = vand.u32 %v309, 65535
    %v314 = vshrl.u32 %v309, 16
    %v315 = vmul.u32 %v311, %v313
    %v316 = vmul.u32 %v311, %v314
    %v317 = vmul.u32 %v312, %v313
    %v318 = vmul.u32 %v312, %v314
    %v319 = vshll.u32 %v316, 16
    %v320 = vshrl.u32 %v316, 16
    %v321 = vshll.u32 %v317, 16
    %v322 = vshrl.u32 %v317, 16
    %vm323 = vc.u32 %v315, %v319
    %v324 = vsel %vm323, 1, 0
    %v325 = vadd.s32 %v315, %v319
    %v326 = vadd.s32 %v318, %v324
    %vm327 = vc.u32 %v325, %v321
    %v328 = vsel %vm327, 1, 0
    %v329 = vadd.s32 %v325, %v321
    %v330 = vadd.s32 %v326, %v328
    %v331 = vadd.s32 %v330, %v320
    %v332 = vadd.s32 %v331, %v322
    %v333 = vand.u32 %v310, 65535
    %v334 = vshrl.u32 %v310, 16
    %v335 = vand.u32 %v305, 65535
    %v336 = vshrl.u32 %v305, 16
    %v337 = vmul.u32 %v333, %v335
    %v338 = vmul.u32 %v333, %v336
    %v339 = vmul.u32 %v334, %v335
    %v340 = vmul.u32 %v334, %v336
    %v341 = vshll.u32 %v338, 16
    %v342 = vshrl.u32 %v338, 16
    %v343 = vshll.u32 %v339, 16
    %v344 = vshrl.u32 %v339, 16
    %vm345 = vc.u32 %v337, %v341
    %v346 = vsel %vm345, 1, 0
    %v347 = vadd.s32 %v337, %v341
    %v348 = vadd.s32 %v340, %v346
    %vm349 = vc.u32 %v347, %v343
    %v350 = vsel %vm349, 1, 0
    %v351 = vadd.s32 %v347, %v343
    %v352 = vadd.s32 %v348, %v350
    %v353 = vadd.s32 %v352, %v342
    %v354 = vadd.s32 %v353, %v344
    %v355 = vmul.u32 %v310, %v301
    %v356 = vadd.s32 %v332, %v351
    %vm357 = vc.u32 %v332, %v351
    %v358 = vadd.s32 %v354, 1
    %v359 = vsel %vm357, %v358, %v354
    %v360 = vadd.s32 %v355, %v359
    %v361 = vadd.s32 %v360, 536870912
    %v362 = vshrl.u32 %v361, 30
    %v363 = vshll.u32 %v362, 30
    %v364 = vsub.s32 %v360, %v363
    %vm365 = vcmp.lt.s32.totalorder %v364, 0
    %v366 = vsub.s32 0, %v364
    %v367 = vsel %vm365, %v366, %v364
    %v368 = vclz %v367
    %v369 = vsub.s32 %v368, 2
    %vm370 = vcmp.gt.s32.totalorder 0, %v369
    %v371 = vsel %vm370, 0, %v369
    %v372 = vsub.s32 32, %v371
    %v373 = vshll.u32 %v364, %v371
    %v374 = vshrl.u32 %v356, %v372
    %v375 = vor.u32 %v373, %v374
    %v376 = vsub.s32 4294967266, %v371
    %v377 = vadd.s32 %v376, 127
    %v378 = vshll.u32 %v377, 23
    %v379 = vor.u32 4788187, %v378
    %v380 = vand.u32 2147483647, %v379
    %v382 = vcvt.s32.f32 %v375
    %v383 = vmul.f32 %v382, %v380
    %v384 = vxor.u32 %v383, 2147483648
    %v385 = vsel %vm264, %v384, %v383
    %v386 = vsub.s32 4, %v362
    %v387 = vsel %vm264, %v386, %v362
    %v388 = vsel %vm263, %v107, %v385
    %v389 = vsel %vm263, 0, %v387
    %v390 = vmul.f32 %v388, %v388
    %v391 = vmul.f32 %v390, -0.001358992
    %v392 = vadd.f32 %v391, 0.041655596
    %v393 = vmul.f32 %v390, %v392
    %v394 = vadd.f32 %v393, -0.4999988
    %v395 = vmul.f32 %v390, %v394
    %v396 = vadd.f32 1.0, %v395
    %v397 = vmul.f32 %v388, %v388
    %v398 = vmul.f32 %v397, -0.00019511016
    %v399 = vadd.f32 %v398, 0.008332121
    %v400 = vmul.f32 %v397, %v399
    %v401 = vadd.f32 %v400, -0.16666654
    %v402 = vmul.f32 %v397, %v401
    %v403 = vadd.f32 %v402, 1.0
    %v404 = vmul.f32 %v403, %v388
    %vm405 = vweird.f32 %v107
    %v406 = vand.u32 %v389, 3
    %vm407 = vcmp.lt.s32.totalorder %v406, 2
    %vm408 = vcmp.eq.s32.totalorder %v406, 0
    %v409 = vxor.u32 %v404, 2147483648
    %v410 = vsel %vm408, %v396, %v409
    %vm411 = vcmp.eq.s32.totalorder %v406, 2
    %v412 = vxor.u32 %v396, 2147483648
    %v413 = vsel %vm411, %v412, %v404
    %v414 = vsel %vm407, %v410, %v413
    %v415 = vsel %vm405, nan, %v414
    %v416 = vmul.f32 %v93, %v261
    %v417 = vmul.f32 %v105, %v415
    %v418 = vand.u32 2147483647, %v106
    %vm419 = vcmp.le.f32.partialorder %v418, 0.7853982
    %vm420 = vcmp.lt.s32.totalorder %v106, 0
    %v421 = vand.u32 %v106, 2139095040
    %v422 = vshrl.u32 %v421, 23
    %v423 = vsub.s32 %v422, 127
    %v424 = vand.u32 2147483647, %v106
    %v425 = vand.u32 %v424, 8388607
    %v426 = vor.u32 %v425, 8388608
    %v427 = vsub.s32 0, %v426
    %v428 = vadd.s32 %v423, 1
    %vm429 = vcmp.gt.s32.totalorder %v428, 0
    %v430 = vsel %vm429, %v428, 0
    %v431 = vshrl.u32 %v430, 5
    %v432 = vand.u32 %v430, 31
    %v433 = vsub.s32 32, %v432
    %v434 = vshrl.u32 683565275, %v433
    %v435 = vshll.u32 683565275, %v432
    %v436 = vshrl.u32 2475754826, %v433
    %v437 = vor.u32 %v435, %v436
    %v438 = vshll.u32 2475754826, %v432
    %v439 = vshrl.u32 2131351028, %v433
    %v440 = vor.u32 %v438, %v439
    %v441 = vshll.u32 2131351028, %v432
    %v442 = vshrl.u32 2102212464, %v433
    %v443 = vor.u32 %v441, %v442
    %v444 = vshll.u32 2102212464, %v432
    %v445 = vshrl.u32 920167782, %v433
    %v446 = vor.u32 %v444, %v445
    %v447 = vshll.u32 920167782, %v432
    %v448 = vshrl.u32 1326507024, %v433
    %v449 = vor.u32 %v447, %v448
    %vm450 = vcmp.lt.s32.totalorder %v431, 1
    %vm451 = vcmp.lt.s32.totalorder %v431, 2
    %vm452 = vcmp.lt.s32.totalorder %v431, 3
    %vm453 = vcmp.lt.s32.totalorder %v431, 4
    %v454 = vsel %vm450, %v434, %v437
    %v455 = vsel %vm453, %v443, 2102212464
    %v456 = vsel %vm452, %v440, %v455
    %v457 = vsel %vm451, %v454, %v456
    %v458 = vsel %vm450, %v437, %v440
    %v459 = vsel %vm453, %v446, 920167782
    %v460 = vsel %vm452, %v443, %v459
    %v461 = vsel %vm451, %v458, %v460
    %v462 = vsel %vm450, %v440, %v443
    %v463 = vsel %vm453, %v449, 1326507024
    %v464 = vsel %vm452, %v446, %v463
    %v465 = vsel %vm451, %v462, %v464
    %v466 = vshll.u32 %v426, 8
    %v467 = vand.u32 %v466, 65535
    %v468 = vshrl.u32 %v466, 16
    %v469 = vand.u32 %v465, 65535
    %v470 = vshrl.u32 %v465, 16
    %v471 = vmul.u32 %v467, %v469
    %v472 = vmul.u32 %v467, %v470
    %v473 = vmul.u32 %v468, %v469
    %v474 = vmul.u32 %v468, %v470
    %v475 = vshll.u32 %v472, 16
    %v476 = vshrl.u32 %v472, 16
    %v477 = vshll.u32 %v473, 16
    %v478 = vshrl.u32 %v473, 16
    %vm479 = vc.u32 %v471, %v475
    %v480 = vsel %vm479, 1, 0
    %v481 = vadd.s32 %v471, %v475
    %v482 = vadd.s32 %v474, %v480
    %vm483 = vc.u32 %v481, %v477
    %v484 = vsel %vm483, 1, 0
    %v485 = vadd.s32 %v481, %v477
    %v486 = vadd.s32 %v482, %v484
    %v487 = vadd.s32 %v486, %v476
    %v488 = vadd.s32 %v487, %v478
    %v489 = vand.u32 %v466, 65535
    %v490 = vshrl.u32 %v466, 16
    %v491 = vand.u32 %v461, 65535
    %v492 = vshrl.u32 %v461, 16
    %v493 = vmul.u32 %v489, %v491
    %v494 = vmul.u32 %v489, %v492
    %v495 = vmul.u32 %v490, %v491
    %v496 = vmul.u32 %v490, %v492
    %v497 = vshll.u32 %v494, 16
    %v498 = vshrl.u32 %v494, 16
    %v499 = vshll.u32 %v495, 16
    %v500 = vshrl.u32 %v495, 16
    %vm501 = vc.u32 %v493, %v497
    %v502 = vsel %vm501, 1, 0
    %v503 = vadd.s32 %v493, %v497
    %v504 = vadd.s32 %v496, %v502
    %vm505 = vc.u32 %v503, %v499
    %v506 = vsel %vm505, 1, 0
    %v507 = vadd.s32 %v503, %v499
    %v508 = vadd.s32 %v504, %v506
    %v509 = vadd.s32 %v508, %v498
    %v510 = vadd.s32 %v509, %v500
    %v511 = vmul.u32 %v466, %v457
    %v512 = vadd.s32 %v488, %v507
    %vm513 = vc.u32 %v488, %v507
    %v514 = vadd.s32 %v510, 1
    %v515 = vsel %vm513, %v514, %v510
    %v516 = vadd.s32 %v511, %v515
    %v517 = vadd.s32 %v516, 536870912
    %v518 = vshrl.u32 %v517, 30
    %v519 = vshll.u32 %v518, 30
    %v520 = vsub.s32 %v516, %v519
    %vm521 = vcmp.lt.s32.totalorder %v520, 0
    %v522 = vsub.s32 0, %v520
    %v523 = vsel %vm521, %v522, %v520
    %v524 = vclz %v523
    %v525 = vsub.s32 %v524, 2
    %vm526 = vcmp.gt.s32.totalorder 0, %v525
    %v527 = vsel %vm526, 0, %v525
    %v528 = vsub.s32 32, %v527
    %v529 = vshll.u32 %v520, %v527
    %v530 = vshrl.u32 %v512, %v528
    %v531 = vor.u32 %v529, %v530
    %v532 = vsub.s32 4294967266, %v527
    %v533 = vadd.s32 %v532, 127
    %v534 = vshll.u32 %v533, 23
    %v535 = vor.u32 4788187, %v534
    %v536 = vand.u32 2147483647, %v535
    %v538 = vcvt.s32.f32 %v531
    %v539 = vmul.f32 %v538, %v536
    %v540 = vxor.u32 %v539, 2147483648
    %v541 = vsel %vm420, %v540, %v539
    %v542 = vsub.s32 4, %v518
    %v543 = vsel %vm420, %v542, %v518
    %v544 = vsel %vm419, %v106, %v541
    %v545 = vsel %vm419, 0, %v543
    %v546 = vmul.f32 %v544, %v544
    %v547 = vmul.f32 %v546, -0.001358992
    %v548 = vadd.f32 %v547, 0.041655596
    %v549 = vmul.f32 %v546, %v548
    %v550 = vadd.f32 %v549, -0.4999988
    %v551 = vmul.f32 %v546, %v550
    %v552 = vadd.f32 1.0, %v551
    %v553 = vmul.f32 %v544, %v544
    %v554 = vmul.f32 %v553, -0.00019511016
    %v555 = vadd.f32 %v554, 0.008332121
    %v556 = vmul.f32 %v553, %v555
    %v557 = vadd.f32 %v556, -0.16666654
    %v558 = vmul.f32 %v553, %v557
    %v559 = vadd.f32 %v558, 1.0
    %v560 = vmul.f32 %v559, %v544
    %vm561 = vweird.f32 %v106
    %v562 = vadd.s32 %v545, 3
    %v563 = vand.u32 %v562, 3
    %vm564 = vcmp.lt.s32.totalorder %v563, 2
    %vm565 = vcmp.eq.s32.totalorder %v563, 0
    %v566 = vxor.u32 %v560, 2147483648
    %v567 = vsel %vm565, %v552, %v566
    %vm568 = vcmp.eq.s32.totalorder %v563, 2
    %v569 = vxor.u32 %v552, 2147483648
    %v570 = vsel %vm568, %v569, %v560
    %v571 = vsel %vm564, %v567, %v570
    %v572 = vsel %vm561, nan, %v571
    %v573 = vand.u32 2147483647, %v107
    %vm574 = vcmp.le.f32.partialorder %v573, 0.7853982
    %vm575 = vcmp.lt.s32.totalorder %v107, 0
    %v576 = vand.u32 %v107, 2139095040
    %v577 = vshrl.u32 %v576, 23
    %v578 = vsub.s32 %v577, 127
    %v579 = vand.u32 2147483647, %v107
    %v580 = vand.u32 %v579, 8388607
    %v581 = vor.u32 %v580, 8388608
    %v582 = vsub.s32 0, %v581
    %v583 = vadd.s32 %v578, 1
    %vm584 = vcmp.gt.s32.totalorder %v583, 0
    %v585 = vsel %vm584, %v583, 0
    %v586 = vshrl.u32 %v585, 5
    %v587 = vand.u32 %v585, 31
    %v588 = vsub.s32 32, %v587
    %v589 = vshrl.u32 683565275, %v588
    %v590 = vshll.u32 683565275, %v587
    %v591 = vshrl.u32 2475754826, %v588
    %v592 = vor.u32 %v590, %v591
    %v593 = vshll.u32 2475754826, %v587
    %v594 = vshrl.u32 2131351028, %v588
    %v595 = vor.u32 %v593, %v594
    %v596 = vshll.u32 2131351028, %v587
    %v597 = vshrl.u32 2102212464, %v588
    %v598 = vor.u32 %v596, %v597
    %v599 = vshll.u32 2102212464, %v587
    %v600 = vshrl.u32 920167782, %v588
    %v601 = vor.u32 %v599, %v600
    %v602 = vshll.u32 920167782, %v587
    %v603 = vshrl.u32 1326507024, %v588
    %v604 = vor.u32 %v602, %v603
    %vm605 = vcmp.lt.s32.totalorder %v586, 1
    %vm606 = vcmp.lt.s32.totalorder %v586, 2
    %vm607 = vcmp.lt.s32.totalorder %v586, 3
    %vm608 = vcmp.lt.s32.totalorder %v586, 4
    %v609 = vsel %vm605, %v589, %v592
    %v610 = vsel %vm608, %v598, 2102212464
    %v611 = vsel %vm607, %v595, %v610
    %v612 = vsel %vm606, %v609, %v611
    %v613 = vsel %vm605, %v592, %v595
    %v614 = vsel %vm608, %v601, 920167782
    %v615 = vsel %vm607, %v598, %v614
    %v616 = vsel %vm606, %v613, %v615
    %v617 = vsel %vm605, %v595, %v598
    %v618 = vsel %vm608, %v604, 1326507024
    %v619 = vsel %vm607, %v601, %v618
    %v620 = vsel %vm606, %v617, %v619
    %v621 = vshll.u32 %v581, 8
    %v622 = vand.u32 %v621, 65535
    %v623 = vshrl.u32 %v621, 16
    %v624 = vand.u32 %v620, 65535
    %v625 = vshrl.u32 %v620, 16
    %v626 = vmul.u32 %v622, %v624
    %v627 = vmul.u32 %v622, %v625
    %v628 = vmul.u32 %v623, %v624
    %v629 = vmul.u32 %v623, %v625
    %v630 = vshll.u32 %v627, 16
    %v631 = vshrl.u32 %v627, 16
    %v632 = vshll.u32 %v628, 16
    %v633 = vshrl.u32 %v628, 16
    %vm634 = vc.u32 %v626, %v630
    %v635 = vsel %vm634, 1, 0
    %v636 = vadd.s32 %v626, %v630
    %v637 = vadd.s32 %v629, %v635
    %vm638 = vc.u32 %v636, %v632
    %v639 = vsel %vm638, 1, 0
    %v640 = vadd.s32 %v636, %v632
    %v641 = vadd.s32 %v637, %v639
    %v642 = vadd.s32 %v641, %v631
    %v643 = vadd.s32 %v642, %v633
    %v644 = vand.u32 %v621, 65535
    %v645 = vshrl.u32 %v621, 16
    %v646 = vand.u32 %v616, 65535
    %v647 = vshrl.u32 %v616, 16
    %v648 = vmul.u32 %v644, %v646
    %v649 = vmul.u32 %v644, %v647
    %v650 = vmul.u32 %v645, %v646
    %v651 = vmul.u32 %v645, %v647
    %v652 = vshll.u32 %v649, 16
    %v653 = vshrl.u32 %v649, 16
    %v654 = vshll.u32 %v650, 16
    %v655 = vshrl.u32 %v650, 16
    %vm656 = vc.u32 %v648, %v652
    %v657 = vsel %vm656, 1, 0
    %v658 = vadd.s32 %v648, %v652
    %v659 = vadd.s32 %v651, %v657
    %vm660 = vc.u32 %v658, %v654
    %v661 = vsel %vm660, 1, 0
    %v662 = vadd.s32 %v658, %v654
    %v663 = vadd.s32 %v659, %v661
    %v664 = vadd.s32 %v663, %v653
    %v665 = vadd.s32 %v664, %v655
    %v666 = vmul.u32 %v621, %v612
    %v667 = vadd.s32 %v643, %v662
    %vm668 = vc.u32 %v643, %v662
    %v669 = vadd.s32 %v665, 1
    %v670 = vsel %vm668, %v669, %v665
    %v671 = vadd.s32 %v666, %v670
    %v672 = vadd.s32 %v671, 536870912
    %v673 = vshrl.u32 %v672, 30
    %v674 = vshll.u32 %v673, 30
    %v675 = vsub.s32 %v671, %v674
    %vm676 = vcmp.lt.s32.totalorder %v675, 0
    %v677 = vsub.s32 0, %v675
    %v678 = vsel %vm676, %v677, %v675
    %v679 = vclz %v678
    %v680 = vsub.s32 %v679, 2
    %vm681 = vcmp.gt.s32.totalorder 0, %v680
    %v682 = vsel %vm681, 0, %v680
    %v683 = vsub.s32 32, %v682
    %v684 = vshll.u32 %v675, %v682
    %v685 = vshrl.u32 %v667, %v683
    %v686 = vor.u32 %v684, %v685
    %v687 = vsub.s32 4294967266, %v682
    %v688 = vadd.s32 %v687, 127
    %v689 = vshll.u32 %v688, 23
    %v690 = vor.u32 4788187, %v689
    %v691 = vand.u32 2147483647, %v690
    %v693 = vcvt.s32.f32 %v686
    %v694 = vmul.f32 %v693, %v691
    %v695 = vxor.u32 %v694, 2147483648
    %v696 = vsel %vm575, %v695, %v694
    %v697 = vsub.s32 4, %v673
    %v698 = vsel %vm575, %v697, %v673
    %v699 = vsel %vm574, %v107, %v696
    %v700 = vsel %vm574, 0, %v698
    %v701 = vmul.f32 %v699, %v699
    %v702 = vmul.f32 %v701, -0.001358992
    %v703 = vadd.f32 %v702, 0.041655596
    %v704 = vmul.f32 %v701, %v703
    %v705 = vadd.f32 %v704, -0.4999988
    %v706 = vmul.f32 %v701, %v705
    %v707 = vadd.f32 1.0, %v706
    %v708 = vmul.f32 %v699, %v699
    %v709 = vmul.f32 %v708, -0.00019511016
    %v710 = vadd.f32 %v709, 0.008332121
    %v711 = vmul.f32 %v708, %v710
    %v712 = vadd.f32 %v711, -0.16666654
    %v713 = vmul.f32 %v708, %v712
    %v714 = vadd.f32 %v713, 1.0
    %v715 = vmul.f32 %v714, %v699
    %vm716 = vweird.f32 %v107
    %v717 = vadd.s32 %v700, 3
    %v718 = vand.u32 %v717, 3
    %vm719 = vcmp.lt.s32.totalorder %v718, 2
    %vm720 = vcmp.eq.s32.totalorder %v718, 0
    %v721 = vxor.u32 %v715, 2147483648
    %v722 = vsel %vm720, %v707, %v721
    %vm723 = vcmp.eq.s32.totalorder %v718, 2
    %v724 = vxor.u32 %v707, 2147483648
    %v725 = vsel %vm723, %v724, %v715
    %v726 = vsel %vm719, %v722, %v725
    %v727 = vsel %vm716, nan, %v726
    %v728 = vmul.f32 %v93, %v572
    %v729 = vmul.f32 %v105, %v727
    %v730 = vld [vmem:[#allocation4] sm:$0xff]
    %v733 = vrot.slane %v417, 4
    %vm734 = vcmask 1043456
    %v735 = vsel %vm734, %v416, %v733
    %v737 = vadd.f32 %v730, %v735
    %738 = vst [vmem:[#allocation7] sm:$0xff] %v737
    %v739 = vld [vmem:[#allocation4 + $0x8] sm:$0xff]
    %v742 = vrot.slane %v729, 4
    %v743 = vsel %vm734, %v728, %v742
    %v745 = vadd.f32 %v739, %v743
    %746 = vst [vmem:[#allocation7 + $0x8] sm:$0xff] %v745
    // Predicated region
    $region10: #{tpu_custom_call.1} parent=1 // pred_check
      _
    $region11: #{tpu_custom_call.1} parent=1 // pred_check_branch
      %748 = sbr.rel (0) target = $region13
    $region12: #{tpu_custom_call.1} parent=1 // pred_region
      %750 = vsyncadd [#allocation6], 0
      %s752 = sshll.u32 [#allocation7], 4
      %s753 = int_to_ptr.vmem [resolvable:$true] %s752
      %s754 = sshll.u32 %s2, 4
      %s755 = int_to_ptr.hbm [resolvable:$true] %s754
      %757 = dma.vmem_to_hbm [thread:$0]  %s753, 256, %s755, [#allocation6]
    $region13: #{tpu_custom_call.1} parent=1 // pred_fallthru
      _
    // Predicated region
    $region14: #{tpu_custom_call.1} parent=1 // pred_check
      _
    $region15: #{tpu_custom_call.1} parent=1 // pred_check_branch
      %759 = sbr.rel (0) target = $region17
    $region16: #{tpu_custom_call.1} parent=1 // pred_region
      %761 = dma.done [#allocation6], 256
    $region17: #{tpu_custom_call.1} parent=1 // pred_fallthru
      _
    %762 = vsyncpa [#allocation5], 1
    %763 = vsyncpa [#allocation6], 1

</llo_original>
